<compile_context>
chip_gen: v6e
topology: v6e:2x2x1
jax: 0.10.0
libtpu: 0.0.40
codegen_flags: <defaults>
</compile_context>

<pallas_src>
import functools

import jax
import jax.numpy as jnp
import numpy as np
from jax import lax
from jax.experimental import pallas as pl
from jax.experimental.pallas import tpu as pltpu


def _gap_kernel(x_ref, w_ref, mask_ref, out_ref, *, rows: int):
    """One grid step: attention-pool `rows` batch rows resident in VMEM."""
    w = w_ref[...].astype(x_ref.dtype)            # (1, D) gate weight
    neg_big = jnp.float32(-1e30)                  # finite fill: no NaN if all padded

    def body(r, carry):
        x = x_ref[r]                              # (S, D), native dtype
        pad = mask_ref[r]                         # (S, 1) f32, 1.0 == padded

        # gate_nn(x): VPU multiply + XLU lane reduction with f32 accumulation.
        logits = jnp.sum((x * w).astype(jnp.float32), axis=-1, keepdims=True)  # (S, 1)

        # masked softmax over the sequence (sublane) axis.
        masked = jnp.where(pad > 0, neg_big, logits)
        m = jnp.max(masked, axis=0, keepdims=True)           # (1, 1)
        e = jnp.exp(masked - m)                               # (S, 1)
        denom = jnp.sum(e, axis=0, keepdims=True)             # (1, 1)
        inv = pl.reciprocal(denom, approx=True)               # EUP slot (free)
        inv = inv * (2.0 - denom * inv)                       # one Newton refinement
        weights = jnp.where(pad > 0, jnp.float32(0.0), e * inv)   # (S, 1)

        # (x * weights).sum over the sequence. The torch code appends an extra
        # all-zero pad row to x and weights before summing; that is a no-op
        # for the sum and is elided.
        row = jnp.sum((x * weights.astype(x.dtype)).astype(jnp.float32),
                      axis=0, keepdims=True)                  # (1, D)
        out_ref[pl.ds(r, 1), :] = row.astype(out_ref.dtype)
        return carry

    lax.fori_loop(0, rows, body, 0)


def _pick_tb(batch, seq, dim, itemsize, budget_bytes=24 * 1024 * 1024):
    """Batch rows per grid step so the double-buffered working set fits VMEM."""
    s_pad = ((seq + 7) // 8) * 8
    per_row = 2 * (seq * dim * itemsize          # x tile (double buffered)
                   + s_pad * 128 * 4             # (S, 1) f32 mask tile (lane-padded)
                   + dim * max(itemsize, 4))     # output tile
    tb = max(1, budget_bytes // per_row)
    if tb >= batch:
        return batch
    if batch < 8:
        return batch
    # keep (TB, D) / (TB, S, 1) blocks sublane-aligned
    return min(max(8, (tb // 8) * 8), batch)


def global_attention_pooling(x_dict, gate_w, gate_b=None, pad_mask_dict=None):
    # flatten_tensor_dict: concatenate the per-stream tensors along the seq dim.
    x_flat = jnp.concatenate([x_dict[k] for k in x_dict], axis=1)      # (B, S, D)
    B, S, D = x_flat.shape

    if pad_mask_dict is not None:
        pad_mask = jnp.concatenate([pad_mask_dict[k] for k in pad_mask_dict], axis=1)
        pad_mask = pad_mask.astype(jnp.float32)[..., None]             # (B, S, 1)
    else:
        pad_mask = jnp.zeros((B, S, 1), jnp.float32)

    w = gate_w.reshape(1, D).astype(jnp.float32)
    # gate_b is intentionally NOT used in the kernel: a scalar added to every
    # logit cancels exactly in the softmax, so it is dead math on the hot path.
    del gate_b

    TB = _pick_tb(B, S, D, x_flat.dtype.itemsize)
    grid = (pl.cdiv(B, TB),)
    kernel = functools.partial(_gap_kernel, rows=TB)

    out = pl.pallas_call(
        kernel,
        out_shape=jax.ShapeDtypeStruct((B, D), x_flat.dtype),
        grid_spec=pltpu.PrefetchScalarGridSpec(
            num_scalar_prefetch=0,
            grid=grid,
            in_specs=[
                pl.BlockSpec((TB, S, D), lambda i: (i, 0, 0)),   # x tile (big, dense)
                pl.BlockSpec((1, D), lambda i: (0, 0)),          # gate weight
                pl.BlockSpec((TB, S, 1), lambda i: (i, 0, 0)),   # pad mask
            ],
            out_specs=pl.BlockSpec((TB, D), lambda i: (i, 0)),   # lane-dense output
        ),
        compiler_params=pltpu.CompilerParams(
            dimension_semantics=("parallel",),
            vmem_limit_bytes=32 * 1024 * 1024,
        ),
    )(x_flat, w, pad_mask)
    return out                                                        # (B, D)


def _reference(x_dict, gate_w, gate_b, pad_mask_dict):
    # plain-JAX reference mirroring the torch forward
    x_flat = jnp.concatenate([x_dict[k] for k in x_dict], axis=1)
    logits = x_flat @ gate_w.reshape(-1, 1) + gate_b.reshape(1, 1)     # (B, S, 1)
    if pad_mask_dict is not None:
        mask = jnp.concatenate([pad_mask_dict[k] for k in pad_mask_dict], axis=1)[..., None]
        logits = jnp.where(mask, -jnp.inf, logits)
    weights = jax.nn.softmax(logits, axis=1)
    if pad_mask_dict is not None:
        weights = jnp.where(mask, 0.0, weights)
    return jnp.sum(x_flat * weights, axis=1)


if __name__ == "__main__":
    B, D = 2, 32
    S1, S2 = 4, 4   # two "input streams" concatenated along the seq dim -> S = 8

    key = jax.random.PRNGKey(0)
    k1, k2, kw, kb = jax.random.split(key, 4)

    x_dict = {
        "tracks": jax.random.normal(k1, (B, S1, D), jnp.float32),
        "hits": jax.random.normal(k2, (B, S2, D), jnp.float32),
    }
    # deterministic pad mask: batch 0 has its last two positions padded
    pad_mask_dict = {
        "tracks": jnp.zeros((B, S1), bool),
        "hits": jnp.array([[False, False, True, True],
                           [False, False, False, False]]),
    }

    # gate_nn = nn.Linear(D, 1): weight (1, D), bias (1,)
    gate_w = jax.random.normal(kw, (1, D), jnp.float32) * (1.0 / jnp.sqrt(D))
    gate_b = jax.random.normal(kb, (1,), jnp.float32) * 0.01

    out = global_attention_pooling(x_dict, gate_w, gate_b, pad_mask_dict)
    out = jax.block_until_ready(out)

    ref = _reference(x_dict, gate_w, gate_b, pad_mask_dict)
    np.testing.assert_allclose(np.asarray(out), np.asarray(ref), rtol=1e-4, atol=1e-5)

    print("KERNEL_OK")
</pallas_src>

<mosaic_0001>
module attributes {stable_mosaic.version = 11 : i64} {
  func.func @_gap_kernel(%arg0: i32, %arg1: memref<2x8x32xf32, #tpu.memory_space<vmem>>, %arg2: memref<1x32xf32, #tpu.memory_space<vmem>>, %arg3: memref<2x8x1xf32, #tpu.memory_space<vmem>>, %arg4: memref<2x32xf32, #tpu.memory_space<vmem>>) attributes {dimension_semantics = [#tpu.dimension_semantics<parallel>], iteration_bounds = array<i64: 1>, scalar_prefetch = 0 : i64, scratch_operands = 0 : i64, tpu.core_type = #tpu.core_type<tc>, window_params = [{transform_indices = @transform_0, window_bounds = array<i64: 2, 8, 32>}, {pipeline_mode = #tpu.pipeline_mode<synchronous>, transform_indices = @transform_1, window_bounds = array<i64: 1, 32>}, {transform_indices = @transform_2, window_bounds = array<i64: 2, 8, 1>}, {transform_indices = @transform_3, window_bounds = array<i64: 2, 32>}]} {
    %c0 = arith.constant 0 : index
    %c0_0 = arith.constant 0 : index
    %0 = vector.load %arg2[%c0, %c0_0] : memref<1x32xf32, #tpu.memory_space<vmem>>, vector<1x32xf32>
    %cst = arith.constant -1.000000e+30 : f32
    %c0_i32 = arith.constant 0 : i32
    %c2_i32 = arith.constant 2 : i32
    %1 = arith.addi %c0_i32, %c2_i32 : i32
    %c1_i32 = arith.constant 1 : i32
    scf.for %arg5 = %c0_i32 to %1 step %c1_i32  : i32 {
      %2 = arith.index_cast %arg5 : i32 to index
      %c0_2 = arith.constant 0 : index
      %c0_3 = arith.constant 0 : index
      %3 = vector.load %arg1[%2, %c0_2, %c0_3] : memref<2x8x32xf32, #tpu.memory_space<vmem>>, vector<1x8x32xf32>
      %4 = vector.shape_cast %3 : vector<1x8x32xf32> to vector<8x32xf32>
      %5 = arith.index_cast %arg5 : i32 to index
      %c0_4 = arith.constant 0 : index
      %c0_5 = arith.constant 0 : index
      %6 = vector.load %arg3[%5, %c0_4, %c0_5] : memref<2x8x1xf32, #tpu.memory_space<vmem>>, vector<1x8x1xf32>
      %7 = vector.shape_cast %6 : vector<1x8x1xf32> to vector<8x1xf32>
      %8 = vector.broadcast %0 : vector<1x32xf32> to vector<8x32xf32>
      %9 = arith.mulf %4, %8 : vector<8x32xf32>
      %cst_6 = arith.constant dense<0.000000e+00> : vector<8xf32>
      %10 = vector.multi_reduction <add>, %9, %cst_6 [1] : vector<8x32xf32> to vector<8xf32>
      %11 = vector.shape_cast %10 : vector<8xf32> to vector<8x1xf32>
      %cst_7 = arith.constant 0.000000e+00 : f32
      %12 = vector.broadcast %cst_7 : f32 to vector<8x1xf32>
      %13 = arith.cmpf ogt, %7, %12 : vector<8x1xf32>
      %14 = vector.broadcast %cst : f32 to vector<8x1xf32>
      %15 = arith.select %13, %14, %11 : vector<8x1xi1>, vector<8x1xf32>
      %cst_8 = arith.constant dense<0xFF800000> : vector<1xf32>
      %16 = vector.multi_reduction <maximumf>, %15, %cst_8 [0] : vector<8x1xf32> to vector<1xf32>
      %17 = vector.shape_cast %16 : vector<1xf32> to vector<1x1xf32>
      %18 = vector.broadcast %17 : vector<1x1xf32> to vector<8x1xf32>
      %19 = arith.subf %15, %18 : vector<8x1xf32>
      %20 = math.exp %19 : vector<8x1xf32>
      %cst_9 = arith.constant dense<0.000000e+00> : vector<1xf32>
      %21 = vector.multi_reduction <add>, %20, %cst_9 [0] : vector<8x1xf32> to vector<1xf32>
      %22 = vector.shape_cast %21 : vector<1xf32> to vector<1x1xf32>
      %23 = tpu.reciprocal %22 {approx = true} : vector<1x1xf32> -> vector<1x1xf32>
      %24 = arith.mulf %22, %23 : vector<1x1xf32>
      %cst_10 = arith.constant 2.000000e+00 : f32
      %25 = vector.broadcast %cst_10 : f32 to vector<1x1xf32>
      %26 = arith.subf %25, %24 : vector<1x1xf32>
      %27 = arith.mulf %23, %26 : vector<1x1xf32>
      %cst_11 = arith.constant 0.000000e+00 : f32
      %28 = vector.broadcast %cst_11 : f32 to vector<8x1xf32>
      %29 = arith.cmpf ogt, %7, %28 : vector<8x1xf32>
      %30 = vector.broadcast %27 : vector<1x1xf32> to vector<8x1xf32>
      %31 = arith.mulf %20, %30 : vector<8x1xf32>
      %cst_12 = arith.constant 0.000000e+00 : f32
      %32 = vector.broadcast %cst_12 : f32 to vector<8x1xf32>
      %33 = arith.select %29, %32, %31 : vector<8x1xi1>, vector<8x1xf32>
      %34 = vector.broadcast %33 : vector<8x1xf32> to vector<8x32xf32>
      %35 = arith.mulf %4, %34 : vector<8x32xf32>
      %cst_13 = arith.constant dense<0.000000e+00> : vector<32xf32>
      %36 = vector.multi_reduction <add>, %35, %cst_13 [0] : vector<8x32xf32> to vector<32xf32>
      %37 = vector.shape_cast %36 : vector<32xf32> to vector<1x32xf32>
      %38 = arith.index_cast %arg5 : i32 to index
      %c0_14 = arith.constant 0 : index
      %39 = vector.load %arg4[%38, %c0_14] : memref<2x32xf32, #tpu.memory_space<vmem>>, vector<1x32xf32>
      tpu.vector_store %arg4[%38, %c0_14], %37 {strides = array<i32>} : memref<2x32xf32, #tpu.memory_space<vmem>>, vector<1x32xf32>,
    }
    %c2_i32_1 = arith.constant 2 : i32
    return
  }
  func.func @transform_0(%arg0: i32) -> (i32, i32, i32) {
    %c0_i32 = arith.constant 0 : i32
    %c0_i32_0 = arith.constant 0 : i32
    %c0_i32_1 = arith.constant 0 : i32
    return %arg0, %c0_i32, %c0_i32_0 : i32, i32, i32
  }
  func.func @transform_1(%arg0: i32) -> (i32, i32) {
    %c0_i32 = arith.constant 0 : i32
    %c0_i32_0 = arith.constant 0 : i32
    %c0_i32_1 = arith.constant 0 : i32
    return %c0_i32, %c0_i32_0 : i32, i32
  }
  func.func @transform_2(%arg0: i32) -> (i32, i32, i32) {
    %c0_i32 = arith.constant 0 : i32
    %c0_i32_0 = arith.constant 0 : i32
    %c0_i32_1 = arith.constant 0 : i32
    return %arg0, %c0_i32, %c0_i32_0 : i32, i32, i32
  }
  func.func @transform_3(%arg0: i32) -> (i32, i32) {
    %c0_i32 = arith.constant 0 : i32
    %c0_i32_0 = arith.constant 0 : i32
    return %arg0, %c0_i32 : i32, i32
  }
}

</mosaic_0001>

<llo_original>
// kernel: tpu_custom_call.1
$region0: #{tpu_custom_call.1}
  #allocation0 [shape = 'u32[]', space=smem, size = 0x4, offset = 0x4, fixed_abs, tag = 'smem constant byte address 0x4 - core index']
  #allocation1 [shape = 'u32[144,128]{1,0:T(1,128)}', space=vmem, size = 0x12000, scoped, tag = 'internal scratch']
  %s0 = inlined_call_operand.vmem [shape: f32[2,8,32], index: 0, kind: input, shape index: {}]
  %s1 = inlined_call_operand.vmem [shape: f32[1,32], index: 1, kind: input, shape index: {}]
  %s2 = inlined_call_operand.vmem [shape: f32[2,8,1], index: 2, kind: input, shape index: {}]
  %s3 = inlined_call_operand.hbm [shape: f32[2,32], index: 3, kind: output, shape index: {}]
  %s4 = sld [smem:[#allocation0]]
  $region29: #{tpu_custom_call.1} parent=0
    _
  %s6 = ssub.s32 1, %s4
  %s7 = scalar_select 0, %s6, %s4
  $region1: #{tpu_custom_call.1} parent=0
    #allocation2 [shape = 'u8[1024]{0}', space=vmem, size = 0x400, scoped, tag = 'output window, operand 0, single buffered']
    #allocation3 [shape = 's32[1]{0}', space=sflag, size = 0x4, scoped, tag = 'scoped memory for tpu_custom_call.1']
    %8 = vsyncpa [#allocation3], 0
    // Predicated region
    $region2: #{tpu_custom_call.1} parent=1 // pred_check
      _
    $region3: #{tpu_custom_call.1} parent=1 // pred_check_branch
      %10 = sbr.rel (0) target = $region5
    $region4: #{tpu_custom_call.1} parent=1 // pred_region
      _
    $region5: #{tpu_custom_call.1} parent=1 // pred_fallthru
      _
    // Predicated region
    $region6: #{tpu_custom_call.1} parent=1 // pred_check
      _
    $region7: #{tpu_custom_call.1} parent=1 // pred_check_branch
      %12 = sbr.rel (0) target = $region9
    $region8: #{tpu_custom_call.1} parent=1 // pred_region
      _
    $region9: #{tpu_custom_call.1} parent=1 // pred_fallthru
      _
    // Predicated region
    $region10: #{tpu_custom_call.1} parent=1 // pred_check
      _
    $region11: #{tpu_custom_call.1} parent=1 // pred_check_branch
      %14 = sbr.rel (0) target = $region13
    $region12: #{tpu_custom_call.1} parent=1 // pred_region
      _
    $region13: #{tpu_custom_call.1} parent=1 // pred_fallthru
      _
    %v15 = vld [vmem:[%s1] sm:$0x1]
    loop: start=0, step=1, limit=2
    $region14: #{tpu_custom_call.1} parent=1 // loop_pre_header
      _
    $region15: #{tpu_custom_call.1} parent=1 // loop_header
      %s17 = sphi 0, %s21
      %p18 = scmp.ge.s32.totalorder %s17, 2
    $region16: #{tpu_custom_call.1} parent=1 // loop_header_branch
      %20 = sbr.rel (%p18) target = $region20
    $region17: #{tpu_custom_call.1} parent=1 // loop_body
      %s22 = smul.u32 %s17, 8
      %s23 = scalar_lea.vmem %s0, %s22
      %v24 = vld [vmem:[%s23] sm:$0xff]
      %s25 = scalar_lea.vmem %s2, %s22
      %v26 = vld [vmem:[%s25] sm:$0xff]
      %v28 = vlaneseq
      %v29 = vshrl.u32 %v28, 7
      %v30 = vsub.s32 0, %v29
      %v31 = vrot.slane %v15, %v30
      %v33 = vmul.f32 %v24, %v31
      %vm34 = vcmask 261120
      %v35 = vsel %vm34, %v33, 0.0
      %36 = vadd.xlane.f32.xlu0 %v35
      %v37 = vpop.xlane.xlu0 %36
      %vm38 = vcmp.gt.f32.partialorder %v26, 0.0
      %v39 = vsel %vm38, -1e+30, %v37
      %vm40 = vcmask 7168
      %v41 = vsel %vm40, %v39, -inf
      %v42 = vrot.slane %v41, 4
      %v43 = vmax.f32 %v41, %v42
      %v44 = vrot.slane %v43, 2
      %v45 = vmax.f32 %v43, %v44
      %v46 = vrot.slane %v45, 1
      %v47 = vmax.f32 %v45, %v46
      %v48 = vsub.f32 %v39, %v47
      %v49 = vmul.f32 %v48, 1.442695
      %v50 = vpow.pop %v49
      %v51 = vsel %vm40, %v50, 0.0
      %v52 = vrot.slane %v51, 4
      %v53 = vadd.f32 %v51, %v52
      %v54 = vrot.slane %v53, 2
      %v55 = vadd.f32 %v53, %v54
      %v56 = vrot.slane %v55, 1
      %v57 = vadd.f32 %v55, %v56
      %v58 = vrcp.pop %v57
      %v59 = vmul.f32 %v57, %v58
      %v60 = vsub.f32 2.0, %v59
      %v61 = vmul.f32 %v58, %v60
      %v62 = vmul.f32 %v50, %v61
      %v63 = vsel %vm38, 0.0, %v62
      %65 = vset.pattern.permute.xlu0 0
      %66 = vperm.xlu0 %65, %v63
      %v67 = vpop.permute.xlu0 %66
      %v69 = vmul.f32 %v24, %v67
      %v70 = vsel %vm34, %v69, 0.0
      %v71 = vrot.slane %v70, 4
      %v72 = vadd.f32 %v70, %v71
      %v73 = vrot.slane %v72, 2
      %v74 = vadd.f32 %v72, %v73
      %v75 = vrot.slane %v74, 1
      %v76 = vadd.f32 %v74, %v75
      %s77 = scalar_lea.vmem [#allocation2], %s17
      %vm78 = vcmask 253952
      %79 = vst.msk [vmem:[%s77] sm:$0x1] %vm78, %v76
    $region18: #{tpu_custom_call.1} parent=1 // loop_footer
      %s21 = sadd.s32 1, %s17
    $region19: #{tpu_custom_call.1} parent=1 // loop_footer_branch
      %16 = sbr.rel target = $region15
    $region20: #{tpu_custom_call.1} parent=1 // loop_exit
      _
    // Predicated region
    $region21: #{tpu_custom_call.1} parent=1 // pred_check
      _
    $region22: #{tpu_custom_call.1} parent=1 // pred_check_branch
      %81 = sbr.rel (0) target = $region24
    $region23: #{tpu_custom_call.1} parent=1 // pred_region
      %s83 = ssub.s32 32, 32
      %84 = vsyncadd [#allocation3], %s83
      %s86 = sshll.u32 [#allocation2], 4
      %s87 = int_to_ptr.vmem [resolvable:$true] %s86
      %89 = dma.vmem_to_hbm [thread:$0]  %s87, 32, %s3, [#allocation3]
    $region24: #{tpu_custom_call.1} parent=1 // pred_fallthru
      _
    // Predicated region
    $region25: #{tpu_custom_call.1} parent=1 // pred_check
      _
    $region26: #{tpu_custom_call.1} parent=1 // pred_check_branch
      %91 = sbr.rel (0) target = $region28
    $region27: #{tpu_custom_call.1} parent=1 // pred_region
      %92 = dma.done [#allocation3], 32
    $region28: #{tpu_custom_call.1} parent=1 // pred_fallthru
      _
    %93 = vsyncpa [#allocation3], 1

</llo_original>
